<compile_context>
chip_gen: v6e
topology: v6e:2x2x1
jax: 0.10.0
libtpu: 0.0.40
codegen_flags: <defaults>
</compile_context>

<pallas_src>
import jax
import jax.numpy as jnp
from jax import lax
from jax.experimental import pallas as pl
from jax.experimental.pallas import tpu as pltpu


_TARGET_STEP_BYTES = 8 << 20   # total input HBM bytes moved per grid step
_F32_TEMP_ROWS = 6             # acc + ~5 block-sized f32 temporaries (s/mean/ss/d/std)
_MAX_SLICES = 2                # leading "parallel" axis -> 2 TCs on v7x


def _make_kernel(num_layers: int, tr: int, lanes: int, rows: int,
                 blocks_per_slice: int):
    """Kernel over `num_layers` same-shaped (tr, lanes) input tiles."""
    # num_layers == 1 -> 1/(L-1) is a division by zero; torch.std(ddof=1) on a
    # single sample yields NaN, which `inf` as the multiplier reproduces here
    # (0 * inf = nan -> sqrt(nan) = nan).
    inv_ddof = (1.0 / (num_layers - 1)) if num_layers > 1 else float("inf")

    def kernel(*refs):
        x_refs = refs[:num_layers]
        out_ref = refs[num_layers]       # (1, 8, 128) f32 VMEM partial-sum row
        acc_ref = refs[num_layers + 1]   # (tr, lanes) f32 VMEM scratch

        c = pl.program_id(0)             # slice (TensorCore) index
        i = pl.program_id(1)             # row-block index within the slice

        @pl.when(i == 0)
        def _init():
            acc_ref[...] = jnp.zeros_like(acc_ref)

        # Two-pass unbiased std over the L layer tiles (matches torch.std
        # numerics; avoids the cancellation risk of sum / sum-of-squares).
        # Tiles are VMEM-resident, so the second read per ref is a cheap
        # VMEM re-load; the whole steady state is VPU/EUP work.
        s = x_refs[0][...].astype(jnp.float32)
        for r in x_refs[1:]:
            s = s + r[...].astype(jnp.float32)
        mean = s * jnp.float32(1.0 / num_layers)

        ss = jnp.zeros_like(mean)
        for r in x_refs:
            d = r[...].astype(jnp.float32) - mean
            ss = ss + d * d
        std = jnp.sqrt(ss * jnp.float32(inv_ddof))

        # Accumulate. Only the (at most one) partial boundary block pays for
        # the iota + compare + select; duplicate clamped blocks of the second
        # slice are fully masked out.
        block_start = (c * blocks_per_slice + i) * tr
        fully_valid = block_start + tr <= rows

        @pl.when(fully_valid)
        def _acc_full():
            acc_ref[...] += std

        @pl.when(jnp.logical_not(fully_valid))
        def _acc_masked():
            row_ids = lax.broadcasted_iota(jnp.int32, (tr, lanes), 0)
            mask = (row_ids + block_start) < rows
            acc_ref[...] += jnp.where(mask, std, jnp.float32(0.0))

        @pl.when(i == blocks_per_slice - 1)
        def _finalize():
            partial = jnp.sum(acc_ref[...])
            out_ref[...] = jnp.full((1, 8, 128), partial, dtype=jnp.float32)

    return kernel


def _pick_lanes(n_true: int) -> int:
    for cand in (1024, 512, 256, 128):
        if n_true % cand == 0:
            return cand
    return 512  # ragged: wrapper pads the flat tail up to one row of zeros


def _moe_gating_std_sum(gating_variances):
    """Single Pallas dispatch returning sum(std(stacked, ddof=1)) as a scalar."""
    num_layers = len(gating_variances)
    if num_layers == 0:
        raise ValueError("gating_variances must be a non-empty list")
    shape0 = gating_variances[0].shape
    for g in gating_variances:
        if g.shape != shape0:
            raise ValueError("all gating_variances must share the same shape")

    n_true = gating_variances[0].size
    dtype = gating_variances[0].dtype
    itemsize = jnp.dtype(dtype).itemsize

    # ---- layout: flatten to a lane-dense (rows, lanes) slab -----------------
    lanes = _pick_lanes(n_true)
    n_pad = pl.cdiv(n_true, lanes) * lanes
    rows = n_pad // lanes

    prepared = []
    for g in gating_variances:
        flat = g.reshape(-1)
        if n_pad != n_true:
            # Zero tail pad (< one row). Zeros in every layer -> std 0 -> no
            # contribution; the common (divisible) case does no copy at all.
            flat = jnp.pad(flat, (0, n_pad - n_true))
        prepared.append(flat.reshape(rows, lanes))

    # ---- block sizing: generation-aware VMEM budget --------------------------
    sub = 16 if itemsize < 4 else 8          # sublane multiple (bf16 packs 2/row)
    try:
        vmem_cap = int(pltpu.get_tpu_info().vmem_capacity_bytes)
    except Exception:  # pragma: no cover - conservative fallback
        vmem_cap = 64 << 20
    budget = vmem_cap * 3 // 4               # ~48 MiB v7x, ~96 MiB v5e/v6e

    # Per-row VMEM bytes: 2L double-buffered input rows + f32 acc/temporaries.
    per_row_bytes = lanes * (2 * num_layers * itemsize + _F32_TEMP_ROWS * 4)
    tr_budget = max(sub, budget // per_row_bytes)
    tr_target = max(sub, _TARGET_STEP_BYTES // max(1, num_layers * lanes * itemsize))

    if rows < sub:
        tr = rows                            # block dim == full array dim (allowed)
    else:
        tr = min(tr_budget, tr_target, rows)
        tr = max((tr // sub) * sub, sub)

    row_blocks = pl.cdiv(rows, tr)
    num_slices = min(_MAX_SLICES, row_blocks)      # 2 TCs on v7x, 1 for tiny inputs
    blocks_per_slice = pl.cdiv(row_blocks, num_slices)

    # ---- compiler params ------------------------------------------------------
    block_in_bytes = tr * lanes * itemsize
    need = 2 * num_layers * block_in_bytes + _F32_TEMP_ROWS * tr * lanes * 4 + (2 << 20)
    vmem_limit = int(min(vmem_cap * 9 // 10, max(16 << 20, need)))

    cost = pl.CostEstimate(
        flops=int(5 * num_layers * n_pad),
        transcendentals=int(n_pad),
        bytes_accessed=int(num_layers * n_pad * itemsize + num_slices * 8 * 128 * 4),
    )

    kernel = _make_kernel(num_layers, tr, lanes, rows, blocks_per_slice)

    # Clamp the block index so duplicate steps of the second slice (when the
    # block count is odd / tiny) stay in bounds; the kernel masks them to zero.
    def idx(c, i):
        return (jnp.minimum(c * blocks_per_slice + i, row_blocks - 1), 0)

    partials = pl.pallas_call(
        kernel,
        out_shape=jax.ShapeDtypeStruct((num_slices, 8, 128), jnp.float32),
        grid_spec=pltpu.PrefetchScalarGridSpec(
            num_scalar_prefetch=0,
            grid=(num_slices, blocks_per_slice),
            in_specs=[pl.BlockSpec((tr, lanes), idx) for _ in range(num_layers)],
            out_specs=pl.BlockSpec((1, 8, 128), lambda c, i: (c, 0, 0)),
            scratch_shapes=[pltpu.VMEM((tr, lanes), jnp.float32)],
        ),
        compiler_params=pltpu.CompilerParams(
            dimension_semantics=("parallel", "arbitrary"),
            vmem_limit_bytes=vmem_limit,
        ),
        cost_estimate=cost,
    )(*prepared)

    # Final cross-slice add; 1/N and the coefficient are applied in the wrapper.
    return jnp.sum(partials[:, 0, 0])


def decoder_only_moe_loss(gating_variances, diversity_loss_coefficient=0.0):
    """JAX/Pallas port of DecoderOnlyMoELoss.forward.

    gating_variances: list of same-shaped arrays (one per MoE layer).
    diversity_loss_coefficient must be a static Python number (it is a module
    constructor constant in the PyTorch module).
    Returns (moe_diversity_loss, moe_gating_variances_tensor) scalars.
    """
    if diversity_loss_coefficient > 0:
        n_true = gating_variances[0].size
        std_sum = _moe_gating_std_sum(gating_variances)
        gv = std_sum * jnp.float32(1.0 / n_true)
        loss = gv * jnp.float32(diversity_loss_coefficient)
        return loss, gv
    else:
        # Matches the PyTorch module: do not touch the tensors.
        return jnp.float32(0.0), jnp.float32(0.0)


if __name__ == "__main__":
    def ref(gvs, coeff):
        stacked = jnp.stack([g.astype(jnp.float32) for g in gvs], axis=0)
        gv = jnp.mean(jnp.std(stacked, axis=0, ddof=1))
        return gv * coeff, gv

    coeff = 0.01
    key = jax.random.PRNGKey(0)

    # case 1: f32, 4 layers of shape (8, 128)
    keys = jax.random.split(key, 4)
    gvs = [jnp.square(jax.random.normal(k, (8, 128), jnp.float32)) for k in keys]
    loss, gv = decoder_only_moe_loss(gvs, diversity_loss_coefficient=coeff)
    loss, gv = jax.block_until_ready((loss, gv))
    rl, rg = ref(gvs, coeff)
    assert jnp.allclose(gv, rg, rtol=1e-5, atol=1e-6), (gv, rg)
    assert jnp.allclose(loss, rl, rtol=1e-5, atol=1e-6), (loss, rl)

    # case 2: native bf16 inputs (kernel upcasts in-register)
    gvs_b = [g.astype(jnp.bfloat16) for g in gvs]
    loss_b, gv_b = decoder_only_moe_loss(gvs_b, diversity_loss_coefficient=coeff)
    loss_b, gv_b = jax.block_until_ready((loss_b, gv_b))
    rl_b, rg_b = ref(gvs_b, coeff)
    assert jnp.allclose(gv_b, rg_b, rtol=1e-4, atol=1e-6), (gv_b, rg_b)
    assert jnp.allclose(loss_b, rl_b, rtol=1e-4, atol=1e-6), (loss_b, rl_b)

    # case 3: ragged element count (2 x 100) -> minimal pad + in-kernel handling
    keys3 = jax.random.split(jax.random.PRNGKey(1), 3)
    gvs3 = [jnp.square(jax.random.normal(k, (2, 100), jnp.float32)) for k in keys3]
    loss3, gv3 = decoder_only_moe_loss(gvs3, diversity_loss_coefficient=coeff)
    loss3, gv3 = jax.block_until_ready((loss3, gv3))
    rl3, rg3 = ref(gvs3, coeff)
    assert jnp.allclose(gv3, rg3, rtol=1e-5, atol=1e-6), (gv3, rg3)
    assert jnp.allclose(loss3, rl3, rtol=1e-5, atol=1e-6), (loss3, rl3)

    # case 4: multi-row with a partial boundary block + 2-slice split
    keys4 = jax.random.split(jax.random.PRNGKey(2), 5)
    gvs4 = [jnp.square(jax.random.normal(k, (40, 512), jnp.float32)) for k in keys4]
    loss4, gv4 = decoder_only_moe_loss(gvs4, diversity_loss_coefficient=coeff)
    loss4, gv4 = jax.block_until_ready((loss4, gv4))
    rl4, rg4 = ref(gvs4, coeff)
    assert jnp.allclose(gv4, rg4, rtol=1e-5, atol=1e-6), (gv4, rg4)
    assert jnp.allclose(loss4, rl4, rtol=1e-5, atol=1e-6), (loss4, rl4)

    # case 5: zero coefficient branch (tensors untouched)
    l0, g0 = decoder_only_moe_loss(gvs, diversity_loss_coefficient=0.0)
    l0, g0 = jax.block_until_ready((l0, g0))
    assert float(l0) == 0.0 and float(g0) == 0.0

    print("KERNEL_OK")
</pallas_src>

<mosaic_0001>
module attributes {stable_mosaic.version = 11 : i64} {
  func.func @kernel(%arg0: i32, %arg1: i32, %arg2: memref<1x1024xf32, #tpu.memory_space<vmem>>, %arg3: memref<1x1024xf32, #tpu.memory_space<vmem>>, %arg4: memref<1x1024xf32, #tpu.memory_space<vmem>>, %arg5: memref<1x1024xf32, #tpu.memory_space<vmem>>, %arg6: memref<1x8x128xf32, #tpu.memory_space<vmem>>, %arg7: memref<1x1024xf32, #tpu.memory_space<vmem>>) attributes {dimension_semantics = [#tpu.dimension_semantics<parallel>, #tpu.dimension_semantics<arbitrary>], iteration_bounds = array<i64: 1, 1>, scalar_prefetch = 0 : i64, scratch_operands = 1 : i64, tpu.core_type = #tpu.core_type<tc>, window_params = [{transform_indices = @transform_0, window_bounds = array<i64: 1, 1024>}, {transform_indices = @transform_1, window_bounds = array<i64: 1, 1024>}, {transform_indices = @transform_2, window_bounds = array<i64: 1, 1024>}, {transform_indices = @transform_3, window_bounds = array<i64: 1, 1024>}, {transform_indices = @transform_4, window_bounds = array<i64: 1, 8, 128>}]} {
    %c0_i32 = arith.constant 0 : i32
    %0 = arith.cmpi eq, %arg1, %c0_i32 : i32
    %1 = arith.extui %0 : i1 to i32
    %c0_i32_0 = arith.constant 0 : i32
    %2 = arith.cmpi ne, %1, %c0_i32_0 : i32
    scf.if %2 {
      %cst_25 = arith.constant 0.000000e+00 : f32
      %45 = vector.broadcast %cst_25 : f32 to vector<1x1024xf32>
      %c0_26 = arith.constant 0 : index
      %c0_27 = arith.constant 0 : index
      %46 = vector.load %arg7[%c0_26, %c0_27] : memref<1x1024xf32, #tpu.memory_space<vmem>>, vector<1x1024xf32>
      tpu.vector_store %arg7[%c0_26, %c0_27], %45 {strides = array<i32>} : memref<1x1024xf32, #tpu.memory_space<vmem>>, vector<1x1024xf32>,
    } else {
    }
    %c0 = arith.constant 0 : index
    %c0_1 = arith.constant 0 : index
    %3 = vector.load %arg2[%c0, %c0_1] : memref<1x1024xf32, #tpu.memory_space<vmem>>, vector<1x1024xf32>
    %c0_2 = arith.constant 0 : index
    %c0_3 = arith.constant 0 : index
    %4 = vector.load %arg3[%c0_2, %c0_3] : memref<1x1024xf32, #tpu.memory_space<vmem>>, vector<1x1024xf32>
    %5 = arith.addf %3, %4 : vector<1x1024xf32>
    %c0_4 = arith.constant 0 : index
    %c0_5 = arith.constant 0 : index
    %6 = vector.load %arg4[%c0_4, %c0_5] : memref<1x1024xf32, #tpu.memory_space<vmem>>, vector<1x1024xf32>
    %7 = arith.addf %5, %6 : vector<1x1024xf32>
    %c0_6 = arith.constant 0 : index
    %c0_7 = arith.constant 0 : index
    %8 = vector.load %arg5[%c0_6, %c0_7] : memref<1x1024xf32, #tpu.memory_space<vmem>>, vector<1x1024xf32>
    %9 = arith.addf %7, %8 : vector<1x1024xf32>
    %cst = arith.constant 2.500000e-01 : f32
    %10 = vector.broadcast %cst : f32 to vector<1x1024xf32>
    %11 = arith.mulf %9, %10 : vector<1x1024xf32>
    %cst_8 = arith.constant 0.000000e+00 : f32
    %12 = vector.broadcast %cst_8 : f32 to vector<1x1024xf32>
    %c0_9 = arith.constant 0 : index
    %c0_10 = arith.constant 0 : index
    %13 = vector.load %arg2[%c0_9, %c0_10] : memref<1x1024xf32, #tpu.memory_space<vmem>>, vector<1x1024xf32>
    %14 = arith.subf %13, %11 : vector<1x1024xf32>
    %15 = arith.mulf %14, %14 : vector<1x1024xf32>
    %16 = arith.addf %12, %15 : vector<1x1024xf32>
    %c0_11 = arith.constant 0 : index
    %c0_12 = arith.constant 0 : index
    %17 = vector.load %arg3[%c0_11, %c0_12] : memref<1x1024xf32, #tpu.memory_space<vmem>>, vector<1x1024xf32>
    %18 = arith.subf %17, %11 : vector<1x1024xf32>
    %19 = arith.mulf %18, %18 : vector<1x1024xf32>
    %20 = arith.addf %16, %19 : vector<1x1024xf32>
    %c0_13 = arith.constant 0 : index
    %c0_14 = arith.constant 0 : index
    %21 = vector.load %arg4[%c0_13, %c0_14] : memref<1x1024xf32, #tpu.memory_space<vmem>>, vector<1x1024xf32>
    %22 = arith.subf %21, %11 : vector<1x1024xf32>
    %23 = arith.mulf %22, %22 : vector<1x1024xf32>
    %24 = arith.addf %20, %23 : vector<1x1024xf32>
    %c0_15 = arith.constant 0 : index
    %c0_16 = arith.constant 0 : index
    %25 = vector.load %arg5[%c0_15, %c0_16] : memref<1x1024xf32, #tpu.memory_space<vmem>>, vector<1x1024xf32>
    %26 = arith.subf %25, %11 : vector<1x1024xf32>
    %27 = arith.mulf %26, %26 : vector<1x1024xf32>
    %28 = arith.addf %24, %27 : vector<1x1024xf32>
    %cst_17 = arith.constant 0.333333343 : f32
    %29 = vector.broadcast %cst_17 : f32 to vector<1x1024xf32>
    %30 = arith.mulf %28, %29 : vector<1x1024xf32>
    %31 = math.sqrt %30 : vector<1x1024xf32>
    %c1_i32 = arith.constant 1 : i32
    %32 = arith.muli %arg0, %c1_i32 : i32
    %33 = arith.addi %32, %arg1 : i32
    %c1_i32_18 = arith.constant 1 : i32
    %34 = arith.muli %33, %c1_i32_18 : i32
    %c1_i32_19 = arith.constant 1 : i32
    %35 = arith.addi %34, %c1_i32_19 : i32
    %c1_i32_20 = arith.constant 1 : i32
    %36 = arith.cmpi sle, %35, %c1_i32_20 : i32
    %37 = arith.extui %36 : i1 to i32
    %c0_i32_21 = arith.constant 0 : i32
    %38 = arith.cmpi ne, %37, %c0_i32_21 : i32
    scf.if %38 {
      %c0_25 = arith.constant 0 : index
      %c0_26 = arith.constant 0 : index
      %45 = vector.load %arg7[%c0_25, %c0_26] : memref<1x1024xf32, #tpu.memory_space<vmem>>, vector<1x1024xf32>
      %46 = arith.addf %45, %31 : vector<1x1024xf32>
      %c0_27 = arith.constant 0 : index
      %c0_28 = arith.constant 0 : index
      %47 = vector.load %arg7[%c0_27, %c0_28] : memref<1x1024xf32, #tpu.memory_space<vmem>>, vector<1x1024xf32>
      tpu.vector_store %arg7[%c0_27, %c0_28], %46 {strides = array<i32>} : memref<1x1024xf32, #tpu.memory_space<vmem>>, vector<1x1024xf32>,
    } else {
    }
    %true = arith.constant true
    %39 = arith.xori %36, %true : i1
    %40 = arith.extui %39 : i1 to i32
    %c0_i32_22 = arith.constant 0 : i32
    %41 = arith.cmpi ne, %40, %c0_i32_22 : i32
    scf.if %41 {
      %45 = tpu.iota {dimensions = array<i32: 0>} : vector<1x1024xi32>
      %46 = vector.broadcast %34 : i32 to vector<1x1024xi32>
      %47 = arith.addi %45, %46 : vector<1x1024xi32>
      %c1_i32_25 = arith.constant 1 : i32
      %48 = vector.broadcast %c1_i32_25 : i32 to vector<1x1024xi32>
      %49 = arith.cmpi slt, %47, %48 : vector<1x1024xi32>
      %c0_26 = arith.constant 0 : index
      %c0_27 = arith.constant 0 : index
      %50 = vector.load %arg7[%c0_26, %c0_27] : memref<1x1024xf32, #tpu.memory_space<vmem>>, vector<1x1024xf32>
      %cst_28 = arith.constant 0.000000e+00 : f32
      %51 = vector.broadcast %cst_28 : f32 to vector<1x1024xf32>
      %52 = arith.select %49, %31, %51 : vector<1x1024xi1>, vector<1x1024xf32>
      %53 = arith.addf %50, %52 : vector<1x1024xf32>
      %c0_29 = arith.constant 0 : index
      %c0_30 = arith.constant 0 : index
      %54 = vector.load %arg7[%c0_29, %c0_30] : memref<1x1024xf32, #tpu.memory_space<vmem>>, vector<1x1024xf32>
      tpu.vector_store %arg7[%c0_29, %c0_30], %53 {strides = array<i32>} : memref<1x1024xf32, #tpu.memory_space<vmem>>, vector<1x1024xf32>,
    } else {
    }
    %c0_i32_23 = arith.constant 0 : i32
    %42 = arith.cmpi eq, %arg1, %c0_i32_23 : i32
    %43 = arith.extui %42 : i1 to i32
    %c0_i32_24 = arith.constant 0 : i32
    %44 = arith.cmpi ne, %43, %c0_i32_24 : i32
    scf.if %44 {
      %c0_25 = arith.constant 0 : index
      %c0_26 = arith.constant 0 : index
      %45 = vector.load %arg7[%c0_25, %c0_26] : memref<1x1024xf32, #tpu.memory_space<vmem>>, vector<1x1024xf32>
      %46 = vector.shape_cast %45 : vector<1x1024xf32> to vector<1x1x1024xf32>
      %cst_27 = arith.constant dense<0.000000e+00> : vector<1xf32>
      %47 = vector.multi_reduction <add>, %46, %cst_27 [1, 2] : vector<1x1x1024xf32> to vector<1xf32>
      %48 = vector.shape_cast %47 : vector<1xf32> to vector<1x1x1xf32>
      %49 = vector.extract %48[0, 0, 0] : f32 from vector<1x1x1xf32>
      %50 = vector.broadcast %49 : f32 to vector<1x8x128xf32>
      %c0_28 = arith.constant 0 : index
      %c0_29 = arith.constant 0 : index
      %c0_30 = arith.constant 0 : index
      %51 = vector.load %arg6[%c0_28, %c0_29, %c0_30] : memref<1x8x128xf32, #tpu.memory_space<vmem>>, vector<1x8x128xf32>
      tpu.vector_store %arg6[%c0_28, %c0_29, %c0_30], %50 {strides = array<i32>} : memref<1x8x128xf32, #tpu.memory_space<vmem>>, vector<1x8x128xf32>,
    } else {
    }
    return
  }
  func.func @transform_0(%arg0: i32, %arg1: i32) -> (i32, i32) {
    %c1_i32 = arith.constant 1 : i32
    %0 = arith.muli %arg0, %c1_i32 : i32
    %1 = arith.addi %0, %arg1 : i32
    %c0_i32 = arith.constant 0 : i32
    %2 = arith.minsi %1, %c0_i32 : i32
    %c0_i32_0 = arith.constant 0 : i32
    %c0_i32_1 = arith.constant 0 : i32
    return %2, %c0_i32_0 : i32, i32
  }
  func.func @transform_1(%arg0: i32, %arg1: i32) -> (i32, i32) {
    %c1_i32 = arith.constant 1 : i32
    %0 = arith.muli %arg0, %c1_i32 : i32
    %1 = arith.addi %0, %arg1 : i32
    %c0_i32 = arith.constant 0 : i32
    %2 = arith.minsi %1, %c0_i32 : i32
    %c0_i32_0 = arith.constant 0 : i32
    %c0_i32_1 = arith.constant 0 : i32
    return %2, %c0_i32_0 : i32, i32
  }
  func.func @transform_2(%arg0: i32, %arg1: i32) -> (i32, i32) {
    %c1_i32 = arith.constant 1 : i32
    %0 = arith.muli %arg0, %c1_i32 : i32
    %1 = arith.addi %0, %arg1 : i32
    %c0_i32 = arith.constant 0 : i32
    %2 = arith.minsi %1, %c0_i32 : i32
    %c0_i32_0 = arith.constant 0 : i32
    %c0_i32_1 = arith.constant 0 : i32
    return %2, %c0_i32_0 : i32, i32
  }
  func.func @transform_3(%arg0: i32, %arg1: i32) -> (i32, i32) {
    %c1_i32 = arith.constant 1 : i32
    %0 = arith.muli %arg0, %c1_i32 : i32
    %1 = arith.addi %0, %arg1 : i32
    %c0_i32 = arith.constant 0 : i32
    %2 = arith.minsi %1, %c0_i32 : i32
    %c0_i32_0 = arith.constant 0 : i32
    %c0_i32_1 = arith.constant 0 : i32
    return %2, %c0_i32_0 : i32, i32
  }
  func.func @transform_4(%arg0: i32, %arg1: i32) -> (i32, i32, i32) {
    %c0_i32 = arith.constant 0 : i32
    %c0_i32_0 = arith.constant 0 : i32
    %c0_i32_1 = arith.constant 0 : i32
    return %arg0, %c0_i32, %c0_i32_0 : i32, i32, i32
  }
}

</mosaic_0001>

<llo_original>
// kernel: tpu_custom_call.1
$region0: #{tpu_custom_call.1}
  #allocation0 [shape = 'u32[]', space=smem, size = 0x4, offset = 0x4, fixed_abs, tag = 'smem constant byte address 0x4 - core index']
  #allocation1 [shape = 'u32[144,128]{1,0:T(1,128)}', space=vmem, size = 0x12000, scoped, tag = 'internal scratch']
  #allocation2 [shape = 'f32[1,1024]{1,0:T(1,128)}', space=vmem, size = 0x1000, scoped, tag = 'scratch operand']
  %s0 = inlined_call_operand.hbm [shape: f32[1,1024], index: 0, kind: input, shape index: {}]
  %s1 = inlined_call_operand.hbm [shape: f32[1,1024], index: 1, kind: input, shape index: {}]
  %s2 = inlined_call_operand.hbm [shape: f32[1,1024], index: 2, kind: input, shape index: {}]
  %s3 = inlined_call_operand.hbm [shape: f32[1,1024], index: 3, kind: input, shape index: {}]
  %s4 = inlined_call_operand.hbm [shape: f32[1,8,128], index: 4, kind: output, shape index: {}]
  %s5 = sld [smem:[#allocation0]]
  $region58: #{tpu_custom_call.1} parent=0
    _
  %s7 = ssub.s32 1, %s5
  %s8 = scalar_select 0, %s7, %s5
  $region1: #{tpu_custom_call.1} parent=0
    #allocation3 [shape = 'u8[4096]{0}', space=vmem, size = 0x1000, scoped, tag = 'input window, operand 0, single buffered']
    #allocation4 [shape = 's32[1]{0}', space=sflag, size = 0x4, scoped, tag = 'scoped memory for tpu_custom_call.1']
    #allocation5 [shape = 's32[1]{0}', space=sflag, size = 0x4, scoped, tag = 'scoped memory for tpu_custom_call.1']
    #allocation6 [shape = 'u8[4096]{0}', space=vmem, size = 0x1000, scoped, tag = 'input window, operand 1, single buffered']
    #allocation7 [shape = 's32[1]{0}', space=sflag, size = 0x4, scoped, tag = 'scoped memory for tpu_custom_call.1']
    #allocation8 [shape = 'u8[4096]{0}', space=vmem, size = 0x1000, scoped, tag = 'input window, operand 2, single buffered']
    #allocation9 [shape = 'u8[4096]{0}', space=vmem, size = 0x1000, scoped, tag = 'input window, operand 3, single buffered']
    #allocation10 [shape = 's32[1]{0}', space=sflag, size = 0x4, scoped, tag = 'scoped memory for tpu_custom_call.1']
    #allocation11 [shape = 'u8[4096]{0}', space=vmem, size = 0x1000, scoped, tag = 'output window, operand 0, single buffered']
    %9 = vsyncpa [#allocation4], 0
    %10 = vsyncpa [#allocation7], 0
    %11 = vsyncpa [#allocation10], 0
    %12 = vsyncpa [#allocation5], 0
    // Predicated region
    $region2: #{tpu_custom_call.1} parent=1 // pred_check
      _
    $region3: #{tpu_custom_call.1} parent=1 // pred_check_branch
      %14 = sbr.rel (0) target = $region5
    $region4: #{tpu_custom_call.1} parent=1 // pred_region
      %s15 = sadd.s32 0, 0
      %p16 = scmp.lt.s32.totalorder %s15, 0
      %s17 = scalar_select %p16, %s15, 0
      %s19 = ssub.s32 128, 128
      %20 = vsyncadd [#allocation4], %s19
      %s21 = smul.addr %s17, 8
      %s22 = smul.addr %s21, 16
      %s23 = scalar_lea.hbm %s0, %s22
      %s25 = sshll.u32 [#allocation3], 4
      %s26 = int_to_ptr.vmem [resolvable:$true] %s25
      %28 = dma.hbm_to_vmem [thread:$0]  %s23, 128, %s26, [#allocation4]
    $region5: #{tpu_custom_call.1} parent=1 // pred_fallthru
      _
    // Predicated region
    $region6: #{tpu_custom_call.1} parent=1 // pred_check
      _
    $region7: #{tpu_custom_call.1} parent=1 // pred_check_branch
      %30 = sbr.rel (0) target = $region9
    $region8: #{tpu_custom_call.1} parent=1 // pred_region
      %s31 = sadd.s32 0, 0
      %p32 = scmp.lt.s32.totalorder %s31, 0
      %s33 = scalar_select %p32, %s31, 0
      %s35 = ssub.s32 128, 128
      %36 = vsyncadd [#allocation7], %s35
      %s37 = smul.addr %s33, 8
      %s38 = smul.addr %s37, 16
      %s39 = scalar_lea.hbm %s1, %s38
      %s41 = sshll.u32 [#allocation6], 4
      %s42 = int_to_ptr.vmem [resolvable:$true] %s41
      %44 = dma.hbm_to_vmem [thread:$0]  %s39, 128, %s42, [#allocation7]
    $region9: #{tpu_custom_call.1} parent=1 // pred_fallthru
      _
    // Predicated region
    $region10: #{tpu_custom_call.1} parent=1 // pred_check
      _
    $region11: #{tpu_custom_call.1} parent=1 // pred_check_branch
      %46 = sbr.rel (0) target = $region13
    $region12: #{tpu_custom_call.1} parent=1 // pred_region
      %s47 = sadd.s32 0, 0
      %p48 = scmp.lt.s32.totalorder %s47, 0
      %s49 = scalar_select %p48, %s47, 0
      %s51 = ssub.s32 128, 128
      %52 = vsyncadd [#allocation7], %s51
      %s53 = smul.addr %s49, 8
      %s54 = smul.addr %s53, 16
      %s55 = scalar_lea.hbm %s2, %s54
      %s57 = sshll.u32 [#allocation8], 4
      %s58 = int_to_ptr.vmem [resolvable:$true] %s57
      %60 = dma.hbm_to_vmem [thread:$0]  %s55, 128, %s58, [#allocation7]
    $region13: #{tpu_custom_call.1} parent=1 // pred_fallthru
      _
    // Predicated region
    $region14: #{tpu_custom_call.1} parent=1 // pred_check
      _
    $region15: #{tpu_custom_call.1} parent=1 // pred_check_branch
      %62 = sbr.rel (0) target = $region17
    $region16: #{tpu_custom_call.1} parent=1 // pred_region
      %s63 = sadd.s32 0, 0
      %p64 = scmp.lt.s32.totalorder %s63, 0
      %s65 = scalar_select %p64, %s63, 0
      %s67 = ssub.s32 128, 128
      %68 = vsyncadd [#allocation10], %s67
      %s69 = smul.addr %s65, 8
      %s70 = smul.addr %s69, 16
      %s71 = scalar_lea.hbm %s3, %s70
      %s73 = sshll.u32 [#allocation9], 4
      %s74 = int_to_ptr.vmem [resolvable:$true] %s73
      %76 = dma.hbm_to_vmem [thread:$0]  %s71, 128, %s74, [#allocation10]
    $region17: #{tpu_custom_call.1} parent=1 // pred_fallthru
      _
    // Predicated region
    $region18: #{tpu_custom_call.1} parent=1 // pred_check
      _
    $region19: #{tpu_custom_call.1} parent=1 // pred_check_branch
      %78 = sbr.rel (0) target = $region21
    $region20: #{tpu_custom_call.1} parent=1 // pred_region
      %79 = dma.done [#allocation4], 128
    $region21: #{tpu_custom_call.1} parent=1 // pred_fallthru
      _
    // Predicated region
    $region22: #{tpu_custom_call.1} parent=1 // pred_check
      _
    $region23: #{tpu_custom_call.1} parent=1 // pred_check_branch
      %81 = sbr.rel (0) target = $region25
    $region24: #{tpu_custom_call.1} parent=1 // pred_region
      %82 = dma.done [#allocation7], 128
    $region25: #{tpu_custom_call.1} parent=1 // pred_fallthru
      _
    // Predicated region
    $region26: #{tpu_custom_call.1} parent=1 // pred_check
      _
    $region27: #{tpu_custom_call.1} parent=1 // pred_check_branch
      %84 = sbr.rel (0) target = $region29
    $region28: #{tpu_custom_call.1} parent=1 // pred_region
      %85 = dma.done [#allocation7], 128
    $region29: #{tpu_custom_call.1} parent=1 // pred_fallthru
      _
    // Predicated region
    $region30: #{tpu_custom_call.1} parent=1 // pred_check
      _
    $region31: #{tpu_custom_call.1} parent=1 // pred_check_branch
      %87 = sbr.rel (0) target = $region33
    $region32: #{tpu_custom_call.1} parent=1 // pred_region
      %88 = dma.done [#allocation10], 128
    $region33: #{tpu_custom_call.1} parent=1 // pred_fallthru
      _
    %s89 = sadd.s32 0, 0
    %p90 = scmp.lt.s32.totalorder %s89, 0
    %s91 = scalar_select %p90, %s89, 0
    %s92 = sadd.s32 0, 0
    %p93 = scmp.lt.s32.totalorder %s92, 0
    %s94 = scalar_select %p93, %s92, 0
    %s95 = sadd.s32 0, 0
    %p96 = scmp.lt.s32.totalorder %s95, 0
    %s97 = scalar_select %p96, %s95, 0
    %s98 = sadd.s32 0, 0
    %p99 = scmp.lt.s32.totalorder %s98, 0
    %s100 = scalar_select %p99, %s98, 0
    %p101 = scmp.eq.s32.totalorder 0, 0
    // Predicated region
    $region34: #{tpu_custom_call.1} parent=1 // pred_check
      %p102 = pneg %p101
    $region35: #{tpu_custom_call.1} parent=1 // pred_check_branch
      %104 = sbr.rel (%p102) target = $region37
    $region36: #{tpu_custom_call.1} parent=1 // pred_region
      %105 = vst [vmem:[#allocation2] sm:$0xff] 0.0
    $region37: #{tpu_custom_call.1} parent=1 // pred_fallthru
      _
    %v106 = vld [vmem:[#allocation3] sm:$0xff]
    %v107 = vld [vmem:[#allocation6] sm:$0xff]
    %v108 = vadd.f32 %v106, %v107
    %v109 = vld [vmem:[#allocation8] sm:$0xff]
    %v110 = vadd.f32 %v108, %v109
    %v111 = vld [vmem:[#allocation9] sm:$0xff]
    %v112 = vadd.f32 %v110, %v111
    %v113 = vmul.f32 %v112, 0.25
    %v114 = vsub.f32 %v106, %v113
    %v115 = vmul.f32 %v114, %v114
    %v116 = vadd.f32 %v115, 0.0
    %v117 = vsub.f32 %v107, %v113
    %v118 = vmul.f32 %v117, %v117
    %v119 = vadd.f32 %v116, %v118
    %v120 = vsub.f32 %v109, %v113
    %v121 = vmul.f32 %v120, %v120
    %v122 = vadd.f32 %v119, %v121
    %v123 = vsub.f32 %v111, %v113
    %v124 = vmul.f32 %v123, %v123
    %v125 = vadd.f32 %v122, %v124
    %v126 = vmul.f32 %v125, 0.33333334
    %v127 = vrsqrt.pop %v126
    %v128 = vmul.f32 %v126, %v127
    %vm129 = vcmp.eq.f32.partialorder %v126, inf
    %v130 = vsel %vm129, %v126, %v128
    %vm131 = vcmp.eq.f32.partialorder %v126, 0.0
    %v132 = vand.u32 %v126, 2147483648
    %v133 = vsel %vm131, %v132, %v130
    %s134 = sadd.s32 0, 0
    %s135 = sadd.s32 %s134, 1
    %p136 = scmp.le.s32.totalorder %s135, 1
    // Predicated region
    $region38: #{tpu_custom_call.1} parent=1 // pred_check
      %p137 = pneg %p136
    $region39: #{tpu_custom_call.1} parent=1 // pred_check_branch
      %139 = sbr.rel (%p137) target = $region41
    $region40: #{tpu_custom_call.1} parent=1 // pred_region
      %v140 = vld [vmem:[#allocation2] sm:$0xff]
      %v141 = vadd.f32 %v140, %v133
      %142 = vst [vmem:[#allocation2] sm:$0xff] %v141
    $region41: #{tpu_custom_call.1} parent=1 // pred_fallthru
      _
    %p143 = scmp.gt.s32.totalorder %s135, 1
    // Predicated region
    $region42: #{tpu_custom_call.1} parent=1 // pred_check
      %p144 = pneg %p143
    $region43: #{tpu_custom_call.1} parent=1 // pred_check_branch
      %146 = sbr.rel (%p144) target = $region45
    $region44: #{tpu_custom_call.1} parent=1 // pred_region
      %v147 = vlaneseq
      %v148 = vshrl.u32 %v147, 7
      %v149 = vstv %s134
      %v150 = vadd.s32 %v148, %v149
      %vm151 = vcmp.lt.s32.totalorder %v150, 1
      %v152 = vld [vmem:[#allocation2] sm:$0xff]
      %v154 = vlaneseq
      %v155 = vshrl.u32 %v154, 7
      %v156 = vsub.s32 0, %v155
      %v157 = vrot.slane %v133, %v156
      %v158 = vlaneseq
      %v159 = vshrl.u32 %v158, 7
      %v160 = vsub.s32 1, %v159
      %v161 = vrot.slane %v133, %v160
      %v162 = vlaneseq
      %v163 = vshrl.u32 %v162, 7
      %v164 = vsub.s32 2, %v163
      %v165 = vrot.slane %v133, %v164
      %v166 = vlaneseq
      %v167 = vshrl.u32 %v166, 7
      %v168 = vsub.s32 3, %v167
      %v169 = vrot.slane %v133, %v168
      %v170 = vlaneseq
      %v171 = vshrl.u32 %v170, 7
      %v172 = vsub.s32 4, %v171
      %v173 = vrot.slane %v133, %v172
      %v174 = vlaneseq
      %v175 = vshrl.u32 %v174, 7
      %v176 = vsub.s32 5, %v175
      %v177 = vrot.slane %v133, %v176
      %v178 = vlaneseq
      %v179 = vshrl.u32 %v178, 7
      %v180 = vsub.s32 6, %v179
      %v181 = vrot.slane %v133, %v180
      %v182 = vlaneseq
      %v183 = vshrl.u32 %v182, 7
      %v184 = vsub.s32 7, %v183
      %v185 = vrot.slane %v133, %v184
      %v194 = vsel %vm151, %v157, 0.0
      %v195 = vsel %vm151, %v161, 0.0
      %v196 = vsel %vm151, %v165, 0.0
      %v197 = vsel %vm151, %v169, 0.0
      %v198 = vsel %vm151, %v173, 0.0
      %v199 = vsel %vm151, %v177, 0.0
      %v200 = vsel %vm151, %v181, 0.0
      %v201 = vsel %vm151, %v185, 0.0
      %v210 = vcombine.low %v194, %v195
      %v211 = vcombine.low %v196, %v197
      %v212 = vcombine.low %v198, %v199
      %v213 = vcombine.low %v200, %v201
      %v215 = vunpack.c.l.s4 1966171168
      %v216 = vunpack.c.0.s8 %v215
      %v217 = vlaneseq
      %v218 = vshrl.u32 %v217, 7
      %v219 = vsub.s32 %v216, %v218
      %v220 = vrot.slane %v210, %v219
      %v222 = vunpack.c.l.s4 1966171168
      %v223 = vunpack.c.0.s8 %v222
      %v224 = vlaneseq
      %v225 = vshrl.u32 %v224, 7
      %v226 = vsub.s32 %v223, %v225
      %v227 = vrot.slane %v211, %v226
      %v229 = vunpack.c.l.s4 1966171168
      %v230 = vunpack.c.0.s8 %v229
      %v231 = vlaneseq
      %v232 = vshrl.u32 %v231, 7
      %v233 = vsub.s32 %v230, %v232
      %v234 = vrot.slane %v212, %v233
      %v236 = vunpack.c.l.s4 1966171168
      %v237 = vunpack.c.0.s8 %v236
      %v238 = vlaneseq
      %v239 = vshrl.u32 %v238, 7
      %v240 = vsub.s32 %v237, %v239
      %v241 = vrot.slane %v213, %v240
      %v242 = vcombine.low %v220, %v227
      %v243 = vcombine.low %v234, %v241
      %v245 = vunpack.c.l.s4 1966171168
      %v246 = vunpack.c.0.s8 %v245
      %v247 = vlaneseq
      %v248 = vshrl.u32 %v247, 7
      %v249 = vsub.s32 %v246, %v248
      %v250 = vrot.slane %v242, %v249
      %v252 = vunpack.c.l.s4 1966171168
      %v253 = vunpack.c.0.s8 %v252
      %v254 = vlaneseq
      %v255 = vshrl.u32 %v254, 7
      %v256 = vsub.s32 %v253, %v255
      %v257 = vrot.slane %v243, %v256
      %v258 = vcombine.low %v250, %v257
      %v260 = vadd.f32 %v152, %v258
      %261 = vst [vmem:[#allocation2] sm:$0xff] %v260
    $region45: #{tpu_custom_call.1} parent=1 // pred_fallthru
      _
    // Predicated region
    $region46: #{tpu_custom_call.1} parent=1 // pred_check
      %p262 = pneg %p101
    $region47: #{tpu_custom_call.1} parent=1 // pred_check_branch
      %264 = sbr.rel (%p262) target = $region49
    $region48: #{tpu_custom_call.1} parent=1 // pred_region
      %v265 = vld [vmem:[#allocation2] sm:$0xff]
      %v267 = vlaneseq
      %v268 = vshrl.u32 %v267, 7
      %v269 = vsub.s32 0, %v268
      %v270 = vrot.slane %v265, %v269
      %v271 = vlaneseq
      %v272 = vshrl.u32 %v271, 7
      %v273 = vsub.s32 1, %v272
      %v274 = vrot.slane %v265, %v273
      %v275 = vlaneseq
      %v276 = vshrl.u32 %v275, 7
      %v277 = vsub.s32 2, %v276
      %v278 = vrot.slane %v265, %v277
      %v279 = vlaneseq
      %v280 = vshrl.u32 %v279, 7
      %v281 = vsub.s32 3, %v280
      %v282 = vrot.slane %v265, %v281
      %v283 = vlaneseq
      %v284 = vshrl.u32 %v283, 7
      %v285 = vsub.s32 4, %v284
      %v286 = vrot.slane %v265, %v285
      %v287 = vlaneseq
      %v288 = vshrl.u32 %v287, 7
      %v289 = vsub.s32 5, %v288
      %v290 = vrot.slane %v265, %v289
      %v291 = vlaneseq
      %v292 = vshrl.u32 %v291, 7
      %v293 = vsub.s32 6, %v292
      %v294 = vrot.slane %v265, %v293
      %v295 = vlaneseq
      %v296 = vshrl.u32 %v295, 7
      %v297 = vsub.s32 7, %v296
      %v298 = vrot.slane %v265, %v297
      %vm307 = vcmask 1040384
      %v308 = vsel %vm307, %v270, 0.0
      %v309 = vsel %vm307, %v274, 0.0
      %v310 = vadd.f32 %v308, %v309
      %v311 = vsel %vm307, %v278, 0.0
      %v312 = vadd.f32 %v310, %v311
      %v313 = vsel %vm307, %v282, 0.0
      %v314 = vadd.f32 %v312, %v313
      %v315 = vsel %vm307, %v286, 0.0
      %v316 = vadd.f32 %v314, %v315
      %v317 = vsel %vm307, %v290, 0.0
      %v318 = vadd.f32 %v316, %v317
      %v319 = vsel %vm307, %v294, 0.0
      %v320 = vadd.f32 %v318, %v319
      %v321 = vsel %vm307, %v298, 0.0
      %v322 = vadd.f32 %v320, %v321
      %323 = vadd.xlane.f32.xlu0 %v322
      %v324 = vpop.xlane.xlu0 %323
      %v325 = vrot.slane %v324, 4
      %v326 = vadd.f32 %v324, %v325
      %v327 = vrot.slane %v326, 2
      %v328 = vadd.f32 %v326, %v327
      %v329 = vrot.slane %v328, 1
      %v330 = vadd.f32 %v328, %v329
      %s331 = vtos %v330
      %v332 = vstv %s331
      %333 = vst [vmem:[#allocation11] sm:$0xff] %v332
    $region49: #{tpu_custom_call.1} parent=1 // pred_fallthru
      _
    // Predicated region
    $region50: #{tpu_custom_call.1} parent=1 // pred_check
      _
    $region51: #{tpu_custom_call.1} parent=1 // pred_check_branch
      %335 = sbr.rel (0) target = $region53
    $region52: #{tpu_custom_call.1} parent=1 // pred_region
      %s337 = ssub.s32 128, 128
      %338 = vsyncadd [#allocation5], %s337
      %s340 = sshll.u32 [#allocation11], 4
      %s341 = int_to_ptr.vmem [resolvable:$true] %s340
      %343 = dma.vmem_to_hbm [thread:$0]  %s341, 128, %s4, [#allocation5]
    $region53: #{tpu_custom_call.1} parent=1 // pred_fallthru
      _
    // Predicated region
    $region54: #{tpu_custom_call.1} parent=1 // pred_check
      _
    $region55: #{tpu_custom_call.1} parent=1 // pred_check_branch
      %345 = sbr.rel (0) target = $region57
    $region56: #{tpu_custom_call.1} parent=1 // pred_region
      %346 = dma.done [#allocation5], 128
    $region57: #{tpu_custom_call.1} parent=1 // pred_fallthru
      _
    %347 = vsyncpa [#allocation4], 1
    %348 = vsyncpa [#allocation7], 1
    %349 = vsyncpa [#allocation10], 1
    %350 = vsyncpa [#allocation5], 1

</llo_original>
